<compile_context>
chip_gen: v7x
topology: tpu7x:2x2x1
jax: 0.10.0
libtpu: 0.0.40
codegen_flags: <defaults>
</compile_context>

<pallas_src>
import math
import functools

import jax
import jax.numpy as jnp
from jax.experimental import pallas as pl
from jax.experimental.pallas import tpu as pltpu


# --------------------------------------------------------------------------
# Kernel body
# --------------------------------------------------------------------------
def groupwise_linear_kernel(x_ref, w_ref, b_ref, o_ref):
    # x_ref: (Bt, C, D), w_ref: (1, C, D), b_ref: (1, C), o_ref: (Bt, C)
    # Multiply in the input dtype (bf16 stays packed 16x128 per vreg on
    # v6e/v7x); accumulate the hidden_dim reduction in f32 for accuracy.
    prod = x_ref[...] * w_ref[...]                       # broadcast over Bt
    s = jnp.sum(prod, axis=-1, dtype=jnp.float32)        # (Bt, C), f32 accum
    o_ref[...] = (s + b_ref[...].astype(jnp.float32)).astype(o_ref.dtype)


# --------------------------------------------------------------------------
# VMEM-aware tiling helpers
# --------------------------------------------------------------------------
def _default_vmem_limit_bytes():
    """Scoped-VMEM ceiling derived from the actual chip (fallback: v7x 64 MiB)."""
    try:
        cap = int(getattr(pltpu.get_tpu_info(), "vmem_capacity_bytes"))
    except Exception:
        cap = 64 * 1024 * 1024  # v7x per-TC physical: smallest current gen
    # ~3/4 of physical, capped at 100 MiB, leaves headroom for compiler scratch.
    return min((cap * 3) // 4, 100 * 1024 * 1024)


def _derive_block_b(B, C, D, x_itemsize, w_itemsize, out_itemsize, vmem_budget):
    """Largest batch tile whose full working set fits the VMEM budget."""
    # Resident W (+ its second pipeline buffer) and bias.
    resident = 2 * C * D * w_itemsize + 2 * C * 4
    # Per-batch-row cost: double-buffered x tile + double-buffered output tile.
    per_row = 2 * C * D * x_itemsize + 2 * C * out_itemsize
    avail = vmem_budget - resident
    return max(1, avail // per_row)


# --------------------------------------------------------------------------
# Wrapper
# --------------------------------------------------------------------------
@functools.partial(jax.jit, static_argnames=("block_b", "vmem_limit_bytes"))
def groupwise_linear(x, W, b, *, block_b=None, vmem_limit_bytes=None):
    """x: (B, C, D), W: (1, C, D), b: (1, C) -> (B, C)"""
    B, C, D = x.shape
    out_dtype = x.dtype

    if vmem_limit_bytes is None:
        vmem_limit_bytes = _default_vmem_limit_bytes()

    # ---- choose batch tile ------------------------------------------------
    if block_b is None:
        budget = int(vmem_limit_bytes * 0.85)
        block_b = _derive_block_b(
            B, C, D,
            jnp.dtype(x.dtype).itemsize,
            jnp.dtype(W.dtype).itemsize,
            jnp.dtype(out_dtype).itemsize,
            budget,
        )
        # Keep >= 2 parallel batch tiles when B allows it, so v7x's two
        # TensorCores both get work (neutral on 1-TC v5e/v6e).
        if B >= 32:
            block_b = min(block_b, pl.cdiv(B, 2))

    if block_b >= B:
        # Single tile: block == full array extent, always legal.
        block_b = B
    else:
        # Multi-tile: output block's sublane dim -> multiple of 16 (covers
        # bf16 sublane packing; avoids partial-sublane stores).
        block_b = max(16, (block_b // 16) * 16)

    # ---- ragged batch: no padding; grid over-runs and OOB writes are masked
    grid_b = pl.cdiv(B, block_b)

    out = pl.pallas_call(
        groupwise_linear_kernel,
        out_shape=jax.ShapeDtypeStruct((B, C), out_dtype),
        grid=(grid_b,),
        in_specs=[
            pl.BlockSpec((block_b, C, D), lambda i: (i, 0, 0)),  # stream x
            pl.BlockSpec((1, C, D), lambda i: (0, 0, 0)),        # W resident
            pl.BlockSpec((1, C), lambda i: (0, 0)),              # b resident
        ],
        out_specs=pl.BlockSpec((block_b, C), lambda i: (i, 0)),
        compiler_params=pltpu.CompilerParams(
            # Batch tiles are independent -> parallel (v7x megacore sharding).
            dimension_semantics=("parallel",),
            vmem_limit_bytes=int(vmem_limit_bytes),
        ),
    )(x, W, b)

    return out


# --------------------------------------------------------------------------
# Parameter init matching reset_parameters(): uniform(-stdv, stdv)
# --------------------------------------------------------------------------
def init_params(key, num_class, hidden_dim, dtype=jnp.float32):
    stdv = 1.0 / math.sqrt(hidden_dim)
    kw, kb = jax.random.split(key)
    W = jax.random.uniform(kw, (1, num_class, hidden_dim), dtype,
                           minval=-stdv, maxval=stdv)
    b = jax.random.uniform(kb, (1, num_class), dtype,
                           minval=-stdv, maxval=stdv)
    return W, b


if __name__ == "__main__":
    key = jax.random.PRNGKey(0)

    # ---- small shape from the module spec (single-tile path) --------------
    B, num_class, hidden_dim = 2, 16, 32
    kx, kp, kx2, kx3 = jax.random.split(key, 4)
    x = jax.random.normal(kx, (B, num_class, hidden_dim), jnp.float32)
    W, b = init_params(kp, num_class, hidden_dim)

    out = groupwise_linear(x, W, b)
    jax.block_until_ready(out)
    ref = jnp.sum(W * x, axis=-1) + b
    assert out.shape == (B, num_class)
    assert jnp.allclose(out, ref, atol=1e-5, rtol=1e-5)

    # ---- multi-tile + ragged last block (no padding, OOB writes masked) ---
    B2 = 40
    x2 = jax.random.normal(kx2, (B2, num_class, hidden_dim), jnp.float32)
    out2 = groupwise_linear(x2, W, b, block_b=16)   # grid = 3, last tile ragged
    jax.block_until_ready(out2)
    ref2 = jnp.sum(W * x2, axis=-1) + b
    assert out2.shape == (B2, num_class)
    assert jnp.allclose(out2, ref2, atol=1e-5, rtol=1e-5)

    # ---- bf16 inputs: multiply in bf16, accumulate reduction in f32 -------
    x3 = jax.random.normal(kx3, (B2, num_class, hidden_dim), jnp.float32)
    out3 = groupwise_linear(x3.astype(jnp.bfloat16),
                            W.astype(jnp.bfloat16),
                            b.astype(jnp.bfloat16),
                            block_b=16)
    jax.block_until_ready(out3)
    ref3 = jnp.sum(W * x3, axis=-1) + b
    assert out3.shape == (B2, num_class)
    assert jnp.allclose(out3.astype(jnp.float32), ref3, atol=5e-2, rtol=5e-2)

    print("KERNEL_OK")
</pallas_src>

<mosaic_0001>
module attributes {stable_mosaic.version = 11 : i64} {
  func.func @groupwise_linear_kernel(%arg0: i32, %arg1: memref<2x16x32xf32, #tpu.memory_space<vmem>>, %arg2: memref<1x16x32xf32, #tpu.memory_space<vmem>>, %arg3: memref<1x16xf32, #tpu.memory_space<vmem>>, %arg4: memref<2x16xf32, #tpu.memory_space<vmem>>) attributes {dimension_semantics = [#tpu.dimension_semantics<parallel>], iteration_bounds = array<i64: 1>, scalar_prefetch = 0 : i64, scratch_operands = 0 : i64, tpu.core_type = #tpu.core_type<tc>, window_params = [{transform_indices = @transform_0, window_bounds = array<i64: 2, 16, 32>}, {pipeline_mode = #tpu.pipeline_mode<synchronous>, transform_indices = @transform_1, window_bounds = array<i64: 1, 16, 32>}, {pipeline_mode = #tpu.pipeline_mode<synchronous>, transform_indices = @transform_2, window_bounds = array<i64: 1, 16>}, {transform_indices = @transform_3, window_bounds = array<i64: 2, 16>}]} {
    %c0 = arith.constant 0 : index
    %c0_0 = arith.constant 0 : index
    %c0_1 = arith.constant 0 : index
    %0 = vector.load %arg1[%c0, %c0_0, %c0_1] : memref<2x16x32xf32, #tpu.memory_space<vmem>>, vector<2x16x32xf32>
    %c0_2 = arith.constant 0 : index
    %c0_3 = arith.constant 0 : index
    %c0_4 = arith.constant 0 : index
    %1 = vector.load %arg2[%c0_2, %c0_3, %c0_4] : memref<1x16x32xf32, #tpu.memory_space<vmem>>, vector<1x16x32xf32>
    %2 = vector.broadcast %1 : vector<1x16x32xf32> to vector<2x16x32xf32>
    %3 = arith.mulf %0, %2 : vector<2x16x32xf32>
    %cst = arith.constant dense<0.000000e+00> : vector<2x16xf32>
    %4 = vector.multi_reduction <add>, %3, %cst [2] : vector<2x16x32xf32> to vector<2x16xf32>
    %c0_5 = arith.constant 0 : index
    %c0_6 = arith.constant 0 : index
    %5 = vector.load %arg3[%c0_5, %c0_6] : memref<1x16xf32, #tpu.memory_space<vmem>>, vector<1x16xf32>
    %6 = vector.broadcast %5 : vector<1x16xf32> to vector<2x16xf32>
    %7 = arith.addf %4, %6 : vector<2x16xf32>
    %c0_7 = arith.constant 0 : index
    %c0_8 = arith.constant 0 : index
    %8 = vector.load %arg4[%c0_7, %c0_8] : memref<2x16xf32, #tpu.memory_space<vmem>>, vector<2x16xf32>
    tpu.vector_store %arg4[%c0_7, %c0_8], %7 {strides = array<i32>} : memref<2x16xf32, #tpu.memory_space<vmem>>, vector<2x16xf32>,
    return
  }
  func.func @transform_0(%arg0: i32) -> (i32, i32, i32) {
    %c0_i32 = arith.constant 0 : i32
    %c0_i32_0 = arith.constant 0 : i32
    %c0_i32_1 = arith.constant 0 : i32
    return %arg0, %c0_i32, %c0_i32_0 : i32, i32, i32
  }
  func.func @transform_1(%arg0: i32) -> (i32, i32, i32) {
    %c0_i32 = arith.constant 0 : i32
    %c0_i32_0 = arith.constant 0 : i32
    %c0_i32_1 = arith.constant 0 : i32
    %c0_i32_2 = arith.constant 0 : i32
    return %c0_i32, %c0_i32_0, %c0_i32_1 : i32, i32, i32
  }
  func.func @transform_2(%arg0: i32) -> (i32, i32) {
    %c0_i32 = arith.constant 0 : i32
    %c0_i32_0 = arith.constant 0 : i32
    %c0_i32_1 = arith.constant 0 : i32
    return %c0_i32, %c0_i32_0 : i32, i32
  }
  func.func @transform_3(%arg0: i32) -> (i32, i32) {
    %c0_i32 = arith.constant 0 : i32
    %c0_i32_0 = arith.constant 0 : i32
    return %arg0, %c0_i32 : i32, i32
  }
}

</mosaic_0001>

<llo_original>
// kernel: groupwise_linear.1
$region0: #{groupwise_linear.1}
  #allocation0 [shape = 'u32[]', space=smem, size = 0x4, offset = 0x4, fixed_abs, tag = 'smem constant byte address 0x4 - core index']
  #allocation1 [shape = 'u32[144,128]{1,0:T(1,128)}', space=vmem, size = 0x12000, scoped, tag = 'internal scratch']
  %s0 = inlined_call_operand.hbm [shape: f32[2,16,32], index: 0, kind: input, shape index: {}]
  %s1 = inlined_call_operand.hbm [shape: f32[1,16,32], index: 1, kind: input, shape index: {}]
  %s2 = inlined_call_operand.vmem [shape: f32[1,16], index: 2, kind: input, shape index: {}]
  %s3 = inlined_call_operand.hbm [shape: f32[2,16], index: 3, kind: output, shape index: {}]
  %s4 = sld [smem:[#allocation0]]
  $region30: #{groupwise_linear.1} parent=0
    _
  %s6 = ssub.s32 1, %s4
  %s7 = scalar_select 0, %s6, %s4
  $region1: #{groupwise_linear.1} parent=0
    #allocation2 [shape = 'u8[16384]{0}', space=vmem, size = 0x4000, scoped, tag = 'input window, operand 0, single buffered']
    #allocation3 [shape = 's32[1]{0}', space=sflag, size = 0x4, scoped, tag = 'scoped memory for groupwise_linear.1']
    #allocation4 [shape = 's32[1]{0}', space=sflag, size = 0x4, scoped, tag = 'scoped memory for groupwise_linear.1']
    #allocation5 [shape = 'u8[8192]{0}', space=vmem, size = 0x2000, scoped, tag = 'input window, operand 1, single buffered']
    #allocation6 [shape = 's32[1]{0}', space=sflag, size = 0x4, scoped, tag = 'scoped memory for groupwise_linear.1']
    #allocation7 [shape = 'u8[1024]{0}', space=vmem, size = 0x400, scoped, tag = 'output window, operand 0, single buffered']
    %8 = vsyncpa [#allocation3], 0
    %9 = vsyncpa [#allocation6], 0
    %10 = vsyncpa [#allocation4], 0
    // Predicated region
    $region2: #{groupwise_linear.1} parent=1 // pred_check
      _
    $region3: #{groupwise_linear.1} parent=1 // pred_check_branch
      %12 = sbr.rel (0) target = $region5
    $region4: #{groupwise_linear.1} parent=1 // pred_region
      %s14 = ssub.s32 512, 512
      %15 = vsyncadd [#allocation3], %s14
      %s16 = sshll.u32 [#allocation2], 4
      %s17 = int_to_ptr.vmem [resolvable:$true] %s16
      %22 = dma.hbm_to_vmem [thread:$0]  %s0, 512, %s17, [#allocation3], 128, 128, 8
    $region5: #{groupwise_linear.1} parent=1 // pred_fallthru
      _
    // Predicated region
    $region6: #{groupwise_linear.1} parent=1 // pred_check
      _
    $region7: #{groupwise_linear.1} parent=1 // pred_check_branch
      %24 = sbr.rel (0) target = $region9
    $region8: #{groupwise_linear.1} parent=1 // pred_region
      %s26 = ssub.s32 256, 256
      %27 = vsyncadd [#allocation6], %s26
      %s28 = sshll.u32 [#allocation5], 4
      %s29 = int_to_ptr.vmem [resolvable:$true] %s28
      %34 = dma.hbm_to_vmem [thread:$0]  %s1, 256, %s29, [#allocation6], 128, 128, 8
    $region9: #{groupwise_linear.1} parent=1 // pred_fallthru
      _
    // Predicated region
    $region10: #{groupwise_linear.1} parent=1 // pred_check
      _
    $region11: #{groupwise_linear.1} parent=1 // pred_check_branch
      %36 = sbr.rel (0) target = $region13
    $region12: #{groupwise_linear.1} parent=1 // pred_region
      _
    $region13: #{groupwise_linear.1} parent=1 // pred_fallthru
      _
    // Predicated region
    $region14: #{groupwise_linear.1} parent=1 // pred_check
      _
    $region15: #{groupwise_linear.1} parent=1 // pred_check_branch
      %38 = sbr.rel (0) target = $region17
    $region16: #{groupwise_linear.1} parent=1 // pred_region
      %39 = dma.done [#allocation3], 512
    $region17: #{groupwise_linear.1} parent=1 // pred_fallthru
      _
    // Predicated region
    $region18: #{groupwise_linear.1} parent=1 // pred_check
      _
    $region19: #{groupwise_linear.1} parent=1 // pred_check_branch
      %41 = sbr.rel (0) target = $region21
    $region20: #{groupwise_linear.1} parent=1 // pred_region
      %42 = dma.done [#allocation6], 256
    $region21: #{groupwise_linear.1} parent=1 // pred_fallthru
      _
    %v43 = vld [vmem:[#allocation2] sm:$0xff]
    %v44 = vld [vmem:[#allocation2 + $0x8] sm:$0xff]
    %v45 = vld [vmem:[#allocation2 + $0x10] sm:$0xff]
    %v46 = vld [vmem:[#allocation2 + $0x18] sm:$0xff]
    %v47 = vld [vmem:[#allocation5] sm:$0xff]
    %v48 = vld [vmem:[#allocation5 + $0x8] sm:$0xff]
    %v49 = vmul.f32 %v43, %v47
    %v50 = vmul.f32 %v44, %v48
    %v51 = vmul.f32 %v45, %v47
    %v52 = vmul.f32 %v46, %v48
    %vm53 = vcmask 261120
    %v54 = vsel %vm53, %v49, 0.0
    %55 = vadd.xlane.f32.xlu0 %v54
    %v56 = vpop.xlane.xlu0 %55
    %v57 = vsel %vm53, %v50, 0.0
    %58 = vadd.xlane.f32.xlu0 %v57
    %v59 = vpop.xlane.xlu0 %58
    %v60 = vsel %vm53, %v51, 0.0
    %61 = vadd.xlane.f32.xlu0 %v60
    %v62 = vpop.xlane.xlu0 %61
    %v63 = vsel %vm53, %v52, 0.0
    %64 = vadd.xlane.f32.xlu0 %v63
    %v65 = vpop.xlane.xlu0 %64
    %v66 = vld [vmem:[%s2] sm:$0x1]
    %v68 = vlaneseq
    %v69 = vshrl.u32 %v68, 7
    %v70 = vsub.s32 0, %v69
    %v71 = vrot.slane %v66, %v70
    %73 = vbcast.lane.b32.xlu0 %v71, 256
    %v74 = vpop.permute.xlu0 %73
    %s76 = sor.u32 256, 8
    %77 = vbcast.lane.b32.xlu0 %v71, %s76
    %v78 = vpop.permute.xlu0 %77
    %v81 = vadd.f32 %v56, %v74
    %v82 = vadd.f32 %v59, %v78
    %v83 = vadd.f32 %v62, %v74
    %v84 = vadd.f32 %v65, %v78
    %89 = vset.pattern.permute.xlu0 0
    %90 = vperm.xlu0 %89, %v81
    %v91 = vpop.permute.xlu0 %90
    %92 = vset.pattern.permute.xlu0 0
    %93 = vperm.xlu0 %92, %v82
    %v94 = vpop.permute.xlu0 %93
    %95 = vset.pattern.permute.xlu0 0
    %96 = vperm.xlu0 %95, %v83
    %v97 = vpop.permute.xlu0 %96
    %98 = vset.pattern.permute.xlu0 0
    %99 = vperm.xlu0 %98, %v84
    %v100 = vpop.permute.xlu0 %99
    %v101 = vlaneseq
    %v102 = vand.u32 %v101, 127
    %v103 = vlaneseq
    %v104 = vshrl.u32 %v103, 7
    %v105 = vsub.s32 %v102, %v104
    %v106 = vrot.slane %v91, %v105
    %v107 = vadd.s32 %v102, 4294967288
    %v108 = vlaneseq
    %v109 = vshrl.u32 %v108, 7
    %v110 = vsub.s32 %v107, %v109
    %v111 = vrot.slane %v94, %v110
    %vm112 = vcmask 130112
    %v113 = vsel %vm112, %v111, %v106
    %v114 = vlaneseq
    %v115 = vshrl.u32 %v114, 7
    %v116 = vsub.s32 %v102, %v115
    %v117 = vrot.slane %v97, %v116
    %v118 = vlaneseq
    %v119 = vshrl.u32 %v118, 7
    %v120 = vsub.s32 %v107, %v119
    %v121 = vrot.slane %v100, %v120
    %v122 = vsel %vm112, %v121, %v117
    %vm123 = vcmask 1041409
    %v124 = vsel %vm123, %v122, %v113
    %vm126 = vcmask 123904
    %127 = vst.msk [vmem:[#allocation7] sm:$0x3] %vm126, %v124
    // Predicated region
    $region22: #{groupwise_linear.1} parent=1 // pred_check
      _
    $region23: #{groupwise_linear.1} parent=1 // pred_check_branch
      %129 = sbr.rel (0) target = $region25
    $region24: #{groupwise_linear.1} parent=1 // pred_region
      %s131 = ssub.s32 32, 32
      %132 = vsyncadd [#allocation4], %s131
      %s134 = sshll.u32 [#allocation7], 4
      %s135 = int_to_ptr.vmem [resolvable:$true] %s134
      %137 = dma.vmem_to_hbm [thread:$0]  %s135, 32, %s3, [#allocation4]
    $region25: #{groupwise_linear.1} parent=1 // pred_fallthru
      _
    // Predicated region
    $region26: #{groupwise_linear.1} parent=1 // pred_check
      _
    $region27: #{groupwise_linear.1} parent=1 // pred_check_branch
      %139 = sbr.rel (0) target = $region29
    $region28: #{groupwise_linear.1} parent=1 // pred_region
      %140 = dma.done [#allocation4], 32
    $region29: #{groupwise_linear.1} parent=1 // pred_fallthru
      _
    %141 = vsyncpa [#allocation3], 1
    %142 = vsyncpa [#allocation6], 1
    %143 = vsyncpa [#allocation4], 1

</llo_original>
